<compile_context>
chip_gen: v7x
topology: tpu7x:2x2x1
jax: 0.10.0
libtpu: 0.0.40
codegen_flags: <defaults>
</compile_context>

<pallas_src>
import functools

import jax
import jax.numpy as jnp
from jax import lax
from jax.experimental import pallas as pl
from jax.experimental.pallas import tpu as pltpu


# ----------------------------------------------------------------------------
# Generation-aware VMEM budgets.
# ----------------------------------------------------------------------------
@functools.lru_cache(maxsize=1)
def _vmem_budgets():
    """Returns (vmem_limit_bytes, tile_budget_bytes) for this TPU generation."""
    try:
        cap = pltpu.get_tpu_info().vmem_capacity_bytes
    except Exception:
        cap = 64 * 1024 * 1024          # conservative (v7x-sized) fallback
    if cap >= 128 * 1024 * 1024:        # v5e / v6e: 128 MiB physical VMEM
        return 64 * 1024 * 1024, 48 * 1024 * 1024
    return 32 * 1024 * 1024, 24 * 1024 * 1024   # v7x: 64 MiB per TensorCore


def _choose_tiles(n_rows, row_elems, bytes_per_elem, budget, min_steps=4):
    """Pick (tn, td) block dims for a (n_rows, row_elems) streaming kernel.

    Preference order:
      1. Full rows (td = row_elems) with the largest tn that fits the budget,
         preferring >= min_steps grid steps (v7x: >= 2 pipelined steps per TC),
         then >= 2 steps, then whatever fits.
      2. D-tiling fallback: minimal legal tn (8-row blocks) and the largest
         128-multiple td that fits the budget (large-D robustness).
    """
    def ok_rows(t):
        return n_rows % t == 0 and (t % 8 == 0 or t == n_rows)

    def ok_cols(t):
        return row_elems % t == 0 and (t % 128 == 0 or t == row_elems)

    # 1) full-row blocks.
    cap_rows = budget // max(1, bytes_per_elem * row_elems)
    fitting = [t for t in range(1, n_rows + 1) if ok_rows(t) and t <= cap_rows]
    if fitting:
        for steps in (min_steps, 2):
            pref = [t for t in fitting if n_rows // t >= steps]
            if pref:
                return max(pref), row_elems
        return max(fitting), row_elems

    # 2) D-tiling fallback.
    tn = 8 if n_rows % 8 == 0 else n_rows
    cap_cols = budget // max(1, bytes_per_elem * tn)
    col_fit = [t for t in range(1, row_elems + 1) if ok_cols(t) and t <= cap_cols]
    if col_fit:
        td = max(col_fit)
    else:
        td = 128 if row_elems % 128 == 0 else row_elems
    return tn, td


# ----------------------------------------------------------------------------
# Kernel 1 (fused): net_in = (input + noise * sigma) * c_in(sigma)
#   `noised` is never materialized in HBM; only the network input is written.
# ----------------------------------------------------------------------------
def _net_input_kernel(sig_ref, x_ref, n_ref, out_ref, *, sigma_data):
    sig = sig_ref[...]                                   # (tn, 1) f32
    c_in = lax.rsqrt(sig * sig + sigma_data * sigma_data)
    x = x_ref[...].astype(jnp.float32)
    n = n_ref[...].astype(jnp.float32)
    out_ref[...] = ((x + n * sig) * c_in).astype(out_ref.dtype)


def get_network_input(sigmas, noise2d, x2d, *, sigma_data=0.5,
                      tile_budget_bytes=None):
    """x2d, noise2d: (N, D); sigmas: (N,). Returns net_in (N, D) in x2d.dtype."""
    N, D = x2d.shape
    vmem_limit, budget = _vmem_budgets()
    if tile_budget_bytes is not None:
        budget = tile_budget_bytes
    itemsize = jnp.dtype(x2d.dtype).itemsize
    bpe = 2 * (2 * itemsize + itemsize)      # 2 big inputs + 1 output, 2x buffered
    tn, td = _choose_tiles(N, D, bpe, budget)

    kernel = functools.partial(_net_input_kernel, sigma_data=float(sigma_data))
    sig = sigmas.reshape(N, 1).astype(jnp.float32)
    # TODO(synk): could alias the noise buffer as the output (input_output_aliases)
    # when the caller does not need `noise` afterwards; kept separate here.
    return pl.pallas_call(
        kernel,
        out_shape=jax.ShapeDtypeStruct((N, D), x2d.dtype),
        grid_spec=pltpu.PrefetchScalarGridSpec(
            num_scalar_prefetch=0,
            grid=(N // tn, D // td),
            in_specs=[
                pl.BlockSpec((tn, 1), lambda i, j: (i, 0)),
                pl.BlockSpec((tn, td), lambda i, j: (i, j)),
                pl.BlockSpec((tn, td), lambda i, j: (i, j)),
            ],
            out_specs=pl.BlockSpec((tn, td), lambda i, j: (i, j)),
        ),
        compiler_params=pltpu.CompilerParams(
            dimension_semantics=("parallel", "parallel"),
            vmem_limit_bytes=vmem_limit),
    )(sig, x2d, noise2d)


# ----------------------------------------------------------------------------
# Kernel 2 (fused): EDM denoiser combine + weighted per-sample l2/l1 mean.
#   noised       = net_in * sqrt(sigma^2 + sigma_data^2)      (reconstructed)
#   model_output = net_out * c_out(sigma) + noised * c_skip(sigma)  (VMEM only)
#   loss[b]      = w(sigma_b) * mean_D( (model_output - target)^2 ) (or |.|)
# D may be tiled: partial row-sums accumulate in a VMEM scratch over the
# "arbitrary" last grid axis.
# ----------------------------------------------------------------------------
def _fused_denoise_loss_kernel(sig_ref, netout_ref, netin_ref, tgt_ref, out_ref,
                               acc_ref, *, loss_type, sigma_data, inv_d):
    d = pl.program_id(1)

    @pl.when(d == 0)
    def _():
        acc_ref[...] = jnp.zeros_like(acc_ref)

    sig = sig_ref[...]                                   # (tn, 1) f32
    sig2 = sig * sig
    sd2 = sigma_data * sigma_data
    denom = sig2 + sd2
    rs = lax.rsqrt(denom)
    c_skip = sd2 / denom                                 # (tn, 1)
    c_out = sig * sigma_data * rs                        # (tn, 1)
    s_in = denom * rs                                    # sqrt(denom) = 1 / c_in
    w = denom / (sig2 * sd2)                             # EDM loss weighting

    # TODO(synk): on v7x with bf16 activations the elementwise math below could
    # stay in bf16 on the VPU (keeping only the D-axis accumulation in f32).
    net_out = netout_ref[...].astype(jnp.float32)        # (tn, td)
    net_in = netin_ref[...].astype(jnp.float32)          # (tn, td)
    tgt = tgt_ref[...].astype(jnp.float32)               # (tn, td)

    noised = net_in * s_in                               # never read from HBM
    model_output = net_out * c_out + noised * c_skip     # never written to HBM
    diff = model_output - tgt
    if loss_type == "l2":
        val = diff * diff
    elif loss_type == "l1":
        val = jnp.abs(diff)
    else:
        raise NotImplementedError(f"Unknown loss type {loss_type}")

    acc_ref[...] += jnp.sum(val, axis=-1, keepdims=True)  # partial lane-reduce
    # Write the running value every step; only the last-d writeback per row
    # block survives (output block index is constant along d).
    out_ref[...] = (w * acc_ref[...] * inv_d).astype(out_ref.dtype)


def fused_denoiser_loss(sigmas, net_out2d, net_in2d, target2d, *,
                        loss_type="l2", sigma_data=0.5, tile_budget_bytes=None):
    """net_out2d, net_in2d, target2d: (N, D); sigmas: (N,). Returns (N,) f32."""
    N, D = target2d.shape
    vmem_limit, budget = _vmem_budgets()
    if tile_budget_bytes is not None:
        budget = tile_budget_bytes
    bpe = 2 * (jnp.dtype(net_out2d.dtype).itemsize
               + jnp.dtype(net_in2d.dtype).itemsize
               + jnp.dtype(target2d.dtype).itemsize)
    tn, td = _choose_tiles(N, D, bpe, budget)

    kernel = functools.partial(_fused_denoise_loss_kernel, loss_type=loss_type,
                               sigma_data=float(sigma_data), inv_d=1.0 / D)
    sig = sigmas.reshape(N, 1).astype(jnp.float32)
    out = pl.pallas_call(
        kernel,
        out_shape=jax.ShapeDtypeStruct((N, 1), jnp.float32),
        grid_spec=pltpu.PrefetchScalarGridSpec(
            num_scalar_prefetch=0,
            grid=(N // tn, D // td),
            in_specs=[
                pl.BlockSpec((tn, 1), lambda i, d: (i, 0)),
                pl.BlockSpec((tn, td), lambda i, d: (i, d)),
                pl.BlockSpec((tn, td), lambda i, d: (i, d)),
                pl.BlockSpec((tn, td), lambda i, d: (i, d)),
            ],
            out_specs=pl.BlockSpec((tn, 1), lambda i, d: (i, 0)),
            scratch_shapes=[pltpu.VMEM((tn, 1), jnp.float32)],
        ),
        compiler_params=pltpu.CompilerParams(
            dimension_semantics=("parallel", "arbitrary"),
            vmem_limit_bytes=vmem_limit),
    )(sig, net_out2d, net_in2d, target2d)
    return out[:, 0]


# ----------------------------------------------------------------------------
# Full forward pass of StandardVideoDiffusionLoss._forward
# ----------------------------------------------------------------------------
def standard_video_diffusion_loss_forward(
    network_w,            # (C, C) stand-in "network" weight (1x1 conv)
    input_nchw,           # (N, C, H, W) with N = B * num_video_frames
    batch,                # dict with 'num_video_frames'
    key,                  # PRNG key for sigma sampling + noise
    *,
    loss_type="l2",
    offset_noise_level=0.0,
    p_mean=-1.2, p_std=1.2,      # EDM sigma sampler params
    sigma_data=0.5,              # EDM weighting / denoiser param
    tile_budget_bytes=None,      # test hook to force D-tiling
):
    N, C, H, W = input_nchw.shape
    T = int(batch["num_video_frames"])
    B = N // T
    D = C * H * W

    k_sigma, k_noise = jax.random.split(key)

    # sigma_sampler: EDM log-normal, one sigma per video, repeated across frames
    # (repeat 'b -> (b t)').
    sigmas_b = jnp.exp(p_mean + p_std * jax.random.normal(k_sigma, (B,), jnp.float32))
    sigmas = jnp.repeat(sigmas_b, T)                     # (N,)

    noise = jax.random.normal(k_noise, input_nchw.shape, input_nchw.dtype)
    # TODO(synk): offset_noise_level > 0 branch (extra broadcast noise) not implemented.
    assert offset_noise_level == 0.0

    x2d = input_nchw.reshape(N, D)
    n2d = noise.reshape(N, D)

    # --- Pallas kernel 1 (fused): net_in = (input + noise*sigma) * c_in ------
    # `noised` is never written to HBM and no f32 intermediate is materialized.
    net_in2d = get_network_input(sigmas, n2d, x2d, sigma_data=sigma_data,
                                 tile_budget_bytes=tile_budget_bytes)
    net_in_nchw = net_in2d.reshape(N, C, H, W)

    # additional_model_inputs plumbing (kept for fidelity, unused by the stub)
    image_only_indicator = jnp.zeros((B, T), input_nchw.dtype)
    del image_only_indicator

    # TODO(synk): `network`, `denoiser`, `conditioner` are external nn.Modules
    # passed into forward(); the network is stubbed as a 1x1-conv channel mix
    # run in XLA exactly where the real external UNet would run.  It consumes
    # the already-preconditioned `net_in` (c_in scaling fused into kernel 1).
    net_out = jnp.einsum("oc,nchw->nohw", network_w, net_in_nchw,
                         preferred_element_type=jnp.float32).astype(input_nchw.dtype)

    # --- Pallas kernel 2 (fused): reconstruct noised, EDM combine, weighted
    #     per-sample mean.  model_output never touches HBM.
    loss = fused_denoiser_loss(sigmas, net_out.reshape(N, D), net_in2d, x2d,
                               loss_type=loss_type, sigma_data=sigma_data,
                               tile_budget_bytes=tile_budget_bytes)

    aux = {"sigmas": sigmas, "noise": noise, "net_in": net_in_nchw,
           "net_out": net_out}
    return loss, aux


# ----------------------------------------------------------------------------
# Pure-JAX reference for verification
# ----------------------------------------------------------------------------
def _reference_forward(network_w, input_nchw, sigmas, noise, *, loss_type, sigma_data):
    N, C, H, W = input_nchw.shape
    x = input_nchw.astype(jnp.float32)
    s = sigmas.reshape(N, 1, 1, 1).astype(jnp.float32)
    noised = x + noise.astype(jnp.float32) * s
    sd2 = sigma_data * sigma_data
    c_skip = sd2 / (s * s + sd2)
    c_out = s * sigma_data / jnp.sqrt(s * s + sd2)
    c_in = 1.0 / jnp.sqrt(s * s + sd2)
    net_in = noised * c_in
    net_out = jnp.einsum("oc,nchw->nohw", network_w, net_in)
    model_output = net_out * c_out + noised * c_skip
    w = (sigmas ** 2 + sd2) / (sigmas * sigma_data) ** 2           # (N,)
    diff = (model_output - x).reshape(N, -1)
    val = diff * diff if loss_type == "l2" else jnp.abs(diff)
    loss = jnp.mean(w[:, None] * val, axis=1)
    return loss, net_in


if __name__ == "__main__":
    key = jax.random.PRNGKey(0)
    k_x, k_w, k_fwd = jax.random.split(key, 3)

    # batch = 2 videos, 8 frames each, latent C=4, 16x16 spatial.
    batch_size, num_frames, C, H, W = 2, 8, 4, 16, 16
    N = batch_size * num_frames

    x = jax.random.normal(k_x, (N, C, H, W), jnp.float32)          # NCHW input
    network_w = 0.1 * jax.random.normal(k_w, (C, C), jnp.float32)  # stand-in net
    batch = {"num_video_frames": num_frames}

    loss, aux = standard_video_diffusion_loss_forward(
        network_w, x, batch, k_fwd, loss_type="l2")
    loss = jax.block_until_ready(loss)

    # Verify both Pallas kernels end-to-end against a pure-JAX reference that
    # uses the exact same sigmas / noise arrays.
    ref_loss, ref_net_in = _reference_forward(
        network_w, x, aux["sigmas"], aux["noise"], loss_type="l2", sigma_data=0.5)

    assert loss.shape == (N,)
    assert jnp.allclose(aux["net_in"].astype(jnp.float32), ref_net_in,
                        atol=1e-5, rtol=1e-5)
    assert jnp.allclose(loss, ref_loss, atol=1e-5, rtol=1e-4)

    # Exercise the D-tiling fallback (reduction-accumulate path) with a tiny
    # forced tile budget; same sigmas/noise (same key) -> same reference loss.
    loss_tiled, _ = standard_video_diffusion_loss_forward(
        network_w, x, batch, k_fwd, loss_type="l2", tile_budget_bytes=64 * 1024)
    loss_tiled = jax.block_until_ready(loss_tiled)
    assert jnp.allclose(loss_tiled, ref_loss, atol=1e-5, rtol=1e-4)

    # l1 path.
    loss_l1, aux_l1 = standard_video_diffusion_loss_forward(
        network_w, x, batch, k_fwd, loss_type="l1")
    ref_l1, _ = _reference_forward(
        network_w, x, aux_l1["sigmas"], aux_l1["noise"], loss_type="l1",
        sigma_data=0.5)
    assert jnp.allclose(jax.block_until_ready(loss_l1), ref_l1,
                        atol=1e-5, rtol=1e-4)

    print("KERNEL_OK")
</pallas_src>

<mosaic_0001>
module attributes {stable_mosaic.version = 11 : i64} {
  func.func @_net_input_kernel(%arg0: i32, %arg1: i32, %arg2: memref<8x1xf32, #tpu.memory_space<vmem>>, %arg3: memref<8x1024xf32, #tpu.memory_space<vmem>>, %arg4: memref<8x1024xf32, #tpu.memory_space<vmem>>, %arg5: memref<8x1024xf32, #tpu.memory_space<vmem>>) attributes {dimension_semantics = [#tpu.dimension_semantics<parallel>, #tpu.dimension_semantics<parallel>], iteration_bounds = array<i64: 2, 1>, scalar_prefetch = 0 : i64, scratch_operands = 0 : i64, tpu.core_type = #tpu.core_type<tc>, window_params = [{transform_indices = @transform_0, window_bounds = array<i64: 8, 1>}, {transform_indices = @transform_1, window_bounds = array<i64: 8, 1024>}, {transform_indices = @transform_2, window_bounds = array<i64: 8, 1024>}, {transform_indices = @transform_3, window_bounds = array<i64: 8, 1024>}]} {
    %c0 = arith.constant 0 : index
    %c0_0 = arith.constant 0 : index
    %0 = vector.load %arg2[%c0, %c0_0] : memref<8x1xf32, #tpu.memory_space<vmem>>, vector<8x1xf32>
    %1 = arith.mulf %0, %0 : vector<8x1xf32>
    %cst = arith.constant 2.500000e-01 : f32
    %2 = vector.broadcast %cst : f32 to vector<8x1xf32>
    %3 = arith.addf %1, %2 : vector<8x1xf32>
    %4 = math.rsqrt %3 : vector<8x1xf32>
    %c0_1 = arith.constant 0 : index
    %c0_2 = arith.constant 0 : index
    %5 = vector.load %arg3[%c0_1, %c0_2] : memref<8x1024xf32, #tpu.memory_space<vmem>>, vector<8x1024xf32>
    %c0_3 = arith.constant 0 : index
    %c0_4 = arith.constant 0 : index
    %6 = vector.load %arg4[%c0_3, %c0_4] : memref<8x1024xf32, #tpu.memory_space<vmem>>, vector<8x1024xf32>
    %7 = vector.broadcast %0 : vector<8x1xf32> to vector<8x1024xf32>
    %8 = arith.mulf %6, %7 : vector<8x1024xf32>
    %9 = arith.addf %5, %8 : vector<8x1024xf32>
    %10 = vector.broadcast %4 : vector<8x1xf32> to vector<8x1024xf32>
    %11 = arith.mulf %9, %10 : vector<8x1024xf32>
    %c0_5 = arith.constant 0 : index
    %c0_6 = arith.constant 0 : index
    %12 = vector.load %arg5[%c0_5, %c0_6] : memref<8x1024xf32, #tpu.memory_space<vmem>>, vector<8x1024xf32>
    tpu.vector_store %arg5[%c0_5, %c0_6], %11 {strides = array<i32>} : memref<8x1024xf32, #tpu.memory_space<vmem>>, vector<8x1024xf32>,
    return
  }
  func.func @transform_0(%arg0: i32, %arg1: i32) -> (i32, i32) {
    %c0_i32 = arith.constant 0 : i32
    %c0_i32_0 = arith.constant 0 : i32
    return %arg0, %c0_i32 : i32, i32
  }
  func.func @transform_1(%arg0: i32, %arg1: i32) -> (i32, i32) {
    %c0_i32 = arith.constant 0 : i32
    return %arg0, %arg1 : i32, i32
  }
  func.func @transform_2(%arg0: i32, %arg1: i32) -> (i32, i32) {
    %c0_i32 = arith.constant 0 : i32
    return %arg0, %arg1 : i32, i32
  }
  func.func @transform_3(%arg0: i32, %arg1: i32) -> (i32, i32) {
    %c0_i32 = arith.constant 0 : i32
    return %arg0, %arg1 : i32, i32
  }
}

</mosaic_0001>

<llo_original>
// kernel: tpu_custom_call.1
$region0: #{tpu_custom_call.1}
  #allocation0 [shape = 'u32[]', space=smem, size = 0x4, offset = 0x4, fixed_abs, tag = 'smem constant byte address 0x4 - core index']
  #allocation1 [shape = 'u32[144,128]{1,0:T(1,128)}', space=vmem, size = 0x12000, scoped, tag = 'internal scratch']
  %s0 = inlined_call_operand.vmem [shape: f32[16,1], index: 0, kind: input, shape index: {}]
  %s1 = inlined_call_operand.hbm [shape: f32[16,1024], index: 1, kind: input, shape index: {}]
  %s2 = inlined_call_operand.hbm [shape: f32[16,1024], index: 2, kind: input, shape index: {}]
  %s3 = inlined_call_operand.hbm [shape: f32[16,1024], index: 3, kind: output, shape index: {}]
  %s4 = sld [smem:[#allocation0]]
  $region53: #{tpu_custom_call.1} parent=0
    _
  %s6 = ssub.s32 1, %s4
  %s7 = scalar_select 0, %s6, %s4
  $region1: #{tpu_custom_call.1} parent=0
    #allocation2 [shape = 'u8[65536]{0}', space=vmem, size = 0x10000, scoped, tag = 'input window, operand 1']
    #allocation3 [shape = 's32[2]{0}', space=sflag, size = 0x8, scoped, tag = 'scoped memory for tpu_custom_call.1']
    #allocation4 [shape = 's32[2]{0}', space=sflag, size = 0x8, scoped, tag = 'scoped memory for tpu_custom_call.1']
    #allocation5 [shape = 'u8[65536]{0}', space=vmem, size = 0x10000, scoped, tag = 'input window, operand 2']
    #allocation6 [shape = 's32[2]{0}', space=sflag, size = 0x8, scoped, tag = 'scoped memory for tpu_custom_call.1']
    #allocation7 [shape = 'u8[65536]{0}', space=vmem, size = 0x10000, scoped, tag = 'output window, operand 0']
    %8 = vsyncpa [#allocation3], 0
    %s9 = scalar_lea.sflag [#allocation3], 1
    %10 = vsyncpa %s9, 0
    %11 = vsyncpa [#allocation6], 0
    %s12 = scalar_lea.sflag [#allocation6], 1
    %13 = vsyncpa %s12, 0
    %14 = vsyncpa [#allocation4], 0
    %s15 = scalar_lea.sflag [#allocation4], 1
    %16 = vsyncpa %s15, 0
    loop: start=0, step=1, limit=4
    $region2: #{tpu_custom_call.1} parent=1 // loop_pre_header
      _
    $region3: #{tpu_custom_call.1} parent=1 // loop_header
      %s18 = sphi 0, %s22
      %p19 = scmp.ge.s32.totalorder %s18, 4
      %s25 = sphi 0, %s37
      %s26 = sphi 0, %s33
      %s27 = sphi 0, %s25
      %s28 = sphi 0, %s26
      %s29 = sphi 0, %s27
      %s30 = sphi 0, %s28
      %s40 = sphi 0, %s42
      %s43 = sphi 0, %s40
      %s44 = sphi 0, %s43
      %s60 = sphi 0, %s44
      %s68 = sphi 0, %s70
      %s71 = sphi 0, %s68
      %s72 = sphi 0, %s71
      %s88 = sphi 0, %s72
      %s96 = sphi 0, %s98
      %s99 = sphi 0, %s96
      %s100 = sphi 0, %s99
      %s116 = sphi 0, %s100
      %s124 = sphi 0, %s126
      %s127 = sphi 0, %s124
      %s128 = sphi 0, %s127
      %s144 = sphi 0, %s128
    $region4: #{tpu_custom_call.1} parent=1 // loop_header_branch
      %21 = sbr.rel (%p19) target = $region8
    $region5: #{tpu_custom_call.1} parent=1 // loop_body
      %s23 = ssub.s32 %s18, 1
      %s24 = ssub.s32 %s18, 2
      %s31 = sadd.s32 1, %s26
      %p32 = scmp.ge.s32.totalorder %s31, 1
      %s33 = scalar_select %p32, 0, %s31
      %s34 = sadd.s32 1, %s25
      %s35 = scalar_select %p32, %s34, %s25
      %p36 = scmp.ge.s32.totalorder %s35, 2
      %s37 = scalar_select %p36, 0, %s35
      %s38 = ssub.s32 %s25, %s37
      %p39 = scmp.eq.s32.totalorder %s38, 0
      %s41 = sadd.s32 %s40, 1
      %s42 = scalar_select %p39, %s40, %s41
      %p45 = pneg %p39
      %p46 = scmp.eq.s32.totalorder %s18, 1
      %p47 = por %p45, %p46
      %p48 = scmp.ne.s32.totalorder %s40, %s43
      %p49 = scmp.eq.s32.totalorder %s18, 0
      %p50 = por %p48, %p49
      %p51 = scmp.ne.s32.totalorder %s40, %s43
      %p52 = scmp.eq.s32.totalorder %s23, 1
      %p53 = por %p51, %p52
      %p54 = scmp.ne.s32.totalorder %s43, %s44
      %p55 = scmp.eq.s32.totalorder %s23, 0
      %p56 = por %p54, %p55
      %p57 = scmp.ne.s32.totalorder %s43, %s44
      %p58 = scmp.eq.s32.totalorder %s24, 1
      %p59 = por %p57, %p58
      %p61 = scmp.ne.s32.totalorder %s44, %s60
      %p62 = scmp.eq.s32.totalorder %s24, 0
      %p63 = por %p61, %p62
      %s64 = ssub.s32 %s25, %s37
      %s65 = ssub.s32 %s26, %s33
      %s66 = sor.u32 %s64, %s65
      %p67 = scmp.eq.s32.totalorder %s66, 0
      %s69 = sadd.s32 %s68, 1
      %s70 = scalar_select %p67, %s68, %s69
      %p73 = pneg %p67
      %p74 = scmp.eq.s32.totalorder %s18, 1
      %p75 = por %p73, %p74
      %p76 = scmp.ne.s32.totalorder %s68, %s71
      %p77 = scmp.eq.s32.totalorder %s18, 0
      %p78 = por %p76, %p77
      %p79 = scmp.ne.s32.totalorder %s68, %s71
      %p80 = scmp.eq.s32.totalorder %s23, 1
      %p81 = por %p79, %p80
      %p82 = scmp.ne.s32.totalorder %s71, %s72
      %p83 = scmp.eq.s32.totalorder %s23, 0
      %p84 = por %p82, %p83
      %p85 = scmp.ne.s32.totalorder %s71, %s72
      %p86 = scmp.eq.s32.totalorder %s24, 1
      %p87 = por %p85, %p86
      %p89 = scmp.ne.s32.totalorder %s72, %s88
      %p90 = scmp.eq.s32.totalorder %s24, 0
      %p91 = por %p89, %p90
      %s92 = ssub.s32 %s25, %s37
      %s93 = ssub.s32 %s26, %s33
      %s94 = sor.u32 %s92, %s93
      %p95 = scmp.eq.s32.totalorder %s94, 0
      %s97 = sadd.s32 %s96, 1
      %s98 = scalar_select %p95, %s96, %s97
      %p101 = pneg %p95
      %p102 = scmp.eq.s32.totalorder %s18, 1
      %p103 = por %p101, %p102
      %p104 = scmp.ne.s32.totalorder %s96, %s99
      %p105 = scmp.eq.s32.totalorder %s18, 0
      %p106 = por %p104, %p105
      %p107 = scmp.ne.s32.totalorder %s96, %s99
      %p108 = scmp.eq.s32.totalorder %s23, 1
      %p109 = por %p107, %p108
      %p110 = scmp.ne.s32.totalorder %s99, %s100
      %p111 = scmp.eq.s32.totalorder %s23, 0
      %p112 = por %p110, %p111
      %p113 = scmp.ne.s32.totalorder %s99, %s100
      %p114 = scmp.eq.s32.totalorder %s24, 1
      %p115 = por %p113, %p114
      %p117 = scmp.ne.s32.totalorder %s100, %s116
      %p118 = scmp.eq.s32.totalorder %s24, 0
      %p119 = por %p117, %p118
      %s120 = ssub.s32 %s25, %s37
      %s121 = ssub.s32 %s26, %s33
      %s122 = sor.u32 %s120, %s121
      %p123 = scmp.eq.s32.totalorder %s122, 0
      %s125 = sadd.s32 %s124, 1
      %s126 = scalar_select %p123, %s124, %s125
      %p129 = pneg %p123
      %p130 = scmp.eq.s32.totalorder %s18, 1
      %p131 = por %p129, %p130
      %p132 = scmp.ne.s32.totalorder %s124, %s127
      %p133 = scmp.eq.s32.totalorder %s18, 0
      %p134 = por %p132, %p133
      %p135 = scmp.ne.s32.totalorder %s124, %s127
      %p136 = scmp.eq.s32.totalorder %s23, 1
      %p137 = por %p135, %p136
      %p138 = scmp.ne.s32.totalorder %s127, %s128
      %p139 = scmp.eq.s32.totalorder %s23, 0
      %p140 = por %p138, %p139
      %p141 = scmp.ne.s32.totalorder %s127, %s128
      %p142 = scmp.eq.s32.totalorder %s24, 1
      %p143 = por %p141, %p142
      %p145 = scmp.ne.s32.totalorder %s128, %s144
      %p146 = scmp.eq.s32.totalorder %s24, 0
      %p147 = por %p145, %p146
      %p148 = scmp.le.s32.totalorder 1, %s18
      %p149 = scmp.lt.s32.totalorder %s18, 3
      %p150 = pnand %p148, %p149
      %p151 = pneg %p150
      // Predicated region
      $region9: #{tpu_custom_call.1} parent=5 // pred_check
        _
      $region10: #{tpu_custom_call.1} parent=5 // pred_check_branch
        %153 = sbr.rel (%p150) target = $region12
      $region11: #{tpu_custom_call.1} parent=5 // pred_region
        %s154 = ssub.s32 %s18, 1
      $region12: #{tpu_custom_call.1} parent=5 // pred_fallthru
        _
      %p155 = scmp.lt.s32.totalorder %s18, 2
      // Predicated region
      $region13: #{tpu_custom_call.1} parent=5 // pred_check
        %p156 = pneg %p155
      $region14: #{tpu_custom_call.1} parent=5 // pred_check_branch
        %158 = sbr.rel (%p156) target = $region16
      $region15: #{tpu_custom_call.1} parent=5 // pred_region
        // Predicated region
        $region17: #{tpu_custom_call.1} parent=15 // pred_check
          %p159 = pneg %p50
        $region18: #{tpu_custom_call.1} parent=15 // pred_check_branch
          %161 = sbr.rel (%p159) target = $region20
        $region19: #{tpu_custom_call.1} parent=15 // pred_region
          %p162 = scmp.lt.s32.totalorder %s25, 1
          %s163 = scalar_select %p162, %s25, 1
          %s164 = smul.addr %s163, 8
          %s165 = scalar_lea.vmem %s0, %s164
        $region20: #{tpu_custom_call.1} parent=15 // pred_fallthru
          _
        // Predicated region
        $region21: #{tpu_custom_call.1} parent=15 // pred_check
          %p166 = pneg %p78
        $region22: #{tpu_custom_call.1} parent=15 // pred_check_branch
          %168 = sbr.rel (%p166) target = $region24
        $region23: #{tpu_custom_call.1} parent=15 // pred_region
          %s169 = sand.u32 %s68, 1
          %s170 = scalar_lea.sflag [#allocation3], %s169
          %s171 = sand.u32 %s68, 1
          %s172 = smul.addr %s171, 64
          %s173 = scalar_lea.vmem [#allocation2], %s172
          %s174 = smul.u32 8, %s26
          %s176 = ssub.s32 1024, 1024
          %177 = vsyncadd %s170, %s176
          %s178 = smul.addr %s25, 8
          %s179 = sadd.s32 %s174, %s178
          %s180 = smul.addr %s179, 128
          %s181 = scalar_lea.hbm %s1, %s180
          %s183 = sshll.u32 %s173, 4
          %s184 = int_to_ptr.vmem [resolvable:$true] %s183
          %186 = dma.hbm_to_vmem [thread:$0]  %s181, 1024, %s184, %s170
        $region24: #{tpu_custom_call.1} parent=15 // pred_fallthru
          _
        // Predicated region
        $region25: #{tpu_custom_call.1} parent=15 // pred_check
          %p187 = pneg %p106
        $region26: #{tpu_custom_call.1} parent=15 // pred_check_branch
          %189 = sbr.rel (%p187) target = $region28
        $region27: #{tpu_custom_call.1} parent=15 // pred_region
          %s190 = sand.u32 %s96, 1
          %s191 = scalar_lea.sflag [#allocation6], %s190
          %s192 = sand.u32 %s96, 1
          %s193 = smul.addr %s192, 64
          %s194 = scalar_lea.vmem [#allocation5], %s193
          %s195 = smul.u32 8, %s26
          %s197 = ssub.s32 1024, 1024
          %198 = vsyncadd %s191, %s197
          %s199 = smul.addr %s25, 8
          %s200 = sadd.s32 %s195, %s199
          %s201 = smul.addr %s200, 128
          %s202 = scalar_lea.hbm %s2, %s201
          %s204 = sshll.u32 %s194, 4
          %s205 = int_to_ptr.vmem [resolvable:$true] %s204
          %207 = dma.hbm_to_vmem [thread:$0]  %s202, 1024, %s205, %s191
        $region28: #{tpu_custom_call.1} parent=15 // pred_fallthru
          _
      $region16: #{tpu_custom_call.1} parent=5 // pred_fallthru
        _
      %p208 = scmp.le.s32.totalorder 1, %s18
      %p209 = scmp.lt.s32.totalorder %s18, 3
      %p210 = pnand %p208, %p209
      %p211 = pneg %p210
      // Predicated region
      $region29: #{tpu_custom_call.1} parent=5 // pred_check
        _
      $region30: #{tpu_custom_call.1} parent=5 // pred_check_branch
        %213 = sbr.rel (%p210) target = $region32
      $region31: #{tpu_custom_call.1} parent=5 // pred_region
        %s214 = ssub.s32 %s18, 1
        %s215 = sand.u32 %s71, 1
        %s216 = scalar_lea.sflag [#allocation3], %s215
        %s217 = sand.u32 %s71, 1
        %s218 = smul.addr %s217, 64
        %s219 = scalar_lea.vmem [#allocation2], %s218
        // Predicated region
        $region33: #{tpu_custom_call.1} parent=31 // pred_check
          %p220 = pneg %p84
        $region34: #{tpu_custom_call.1} parent=31 // pred_check_branch
          %222 = sbr.rel (%p220) target = $region36
        $region35: #{tpu_custom_call.1} parent=31 // pred_region
          %223 = dma.done %s216, 1024
        $region36: #{tpu_custom_call.1} parent=31 // pred_fallthru
          _
        %s224 = sand.u32 %s99, 1
        %s225 = scalar_lea.sflag [#allocation6], %s224
        %s226 = sand.u32 %s99, 1
        %s227 = smul.addr %s226, 64
        %s228 = scalar_lea.vmem [#allocation5], %s227
        // Predicated region
        $region37: #{tpu_custom_call.1} parent=31 // pred_check
          %p229 = pneg %p112
        $region38: #{tpu_custom_call.1} parent=31 // pred_check_branch
          %231 = sbr.rel (%p229) target = $region40
        $region39: #{tpu_custom_call.1} parent=31 // pred_region
          %232 = dma.done %s225, 1024
        $region40: #{tpu_custom_call.1} parent=31 // pred_fallthru
          _
        %p233 = scmp.lt.s32.totalorder %s27, 1
        %s234 = scalar_select %p233, %s27, 1
        %s235 = smul.addr %s234, 8
        %s236 = scalar_lea.vmem %s0, %s235
        %p237 = pneg %p56
        %p238 = pneg %p53
        %s239 = sand.u32 %s71, 1
        %s240 = scalar_lea.sflag [#allocation3], %s239
        %s241 = sand.u32 %s71, 1
        %s242 = smul.addr %s241, 64
        %s243 = scalar_lea.vmem [#allocation2], %s242
        %p244 = pneg %p84
        %p245 = pneg %p81
        %s246 = sand.u32 %s99, 1
        %s247 = scalar_lea.sflag [#allocation6], %s246
        %s248 = sand.u32 %s99, 1
        %s249 = smul.addr %s248, 64
        %s250 = scalar_lea.vmem [#allocation5], %s249
        %p251 = pneg %p112
        %p252 = pneg %p109
        %p253 = pneg %p140
        %p254 = pneg %p137
        %s255 = sand.u32 %s127, 1
        %s256 = scalar_lea.sflag [#allocation4], %s255
        %s257 = sand.u32 %s127, 1
        %s258 = smul.addr %s257, 64
        %s259 = scalar_lea.vmem [#allocation7], %s258
        %p260 = scmp.lt.s32.totalorder %s27, 1
        %s261 = scalar_select %p260, %s27, 1
        %s262 = smul.addr %s261, 8
        %s263 = scalar_lea.vmem %s0, %s262
        %s264 = smul.u32 8, %s28
        %s265 = smul.u32 8, %s28
        %s266 = smul.u32 8, %s28
        %v267 = vld [vmem:[%s263] sm:$0xff]
        %v268 = vmul.f32 %v267, %v267
        %v269 = vadd.f32 %v268, 0.25
        %v270 = vrsqrt.pop %v269
        %v271 = vld [vmem:[%s219] sm:$0xff]
        %v272 = vld [vmem:[%s219 + $0x8] sm:$0xff]
        %v273 = vld [vmem:[%s219 + $0x10] sm:$0xff]
        %v274 = vld [vmem:[%s219 + $0x18] sm:$0xff]
        %v275 = vld [vmem:[%s219 + $0x20] sm:$0xff]
        %v276 = vld [vmem:[%s219 + $0x28] sm:$0xff]
        %v277 = vld [vmem:[%s219 + $0x30] sm:$0xff]
        %v278 = vld [vmem:[%s219 + $0x38] sm:$0xff]
        %v279 = vld [vmem:[%s228] sm:$0xff]
        %v280 = vld [vmem:[%s228 + $0x8] sm:$0xff]
        %v281 = vld [vmem:[%s228 + $0x10] sm:$0xff]
        %v282 = vld [vmem:[%s228 + $0x18] sm:$0xff]
        %v283 = vld [vmem:[%s228 + $0x20] sm:$0xff]
        %v284 = vld [vmem:[%s228 + $0x28] sm:$0xff]
        %v285 = vld [vmem:[%s228 + $0x30] sm:$0xff]
        %v286 = vld [vmem:[%s228 + $0x38] sm:$0xff]
        %288 = vset.pattern.permute.xlu0 0
        %289 = vperm.xlu0 %288, %v267
        %v290 = vpop.permute.xlu0 %289
        %v292 = vmul.f32 %v279, %v290
        %v293 = vmul.f32 %v280, %v290
        %v294 = vmul.f32 %v281, %v290
        %v295 = vmul.f32 %v282, %v290
        %v296 = vmul.f32 %v283, %v290
        %v297 = vmul.f32 %v284, %v290
        %v298 = vmul.f32 %v285, %v290
        %v299 = vmul.f32 %v286, %v290
        %v300 = vadd.f32 %v271, %v292
        %v301 = vadd.f32 %v272, %v293
        %v302 = vadd.f32 %v273, %v294
        %v303 = vadd.f32 %v274, %v295
        %v304 = vadd.f32 %v275, %v296
        %v305 = vadd.f32 %v276, %v297
        %v306 = vadd.f32 %v277, %v298
        %v307 = vadd.f32 %v278, %v299
        %309 = vset.pattern.permute.xlu0 0
        %310 = vperm.xlu0 %309, %v270
        %v311 = vpop.permute.xlu0 %310
        %v313 = vmul.f32 %v300, %v311
        %v314 = vmul.f32 %v301, %v311
        %v315 = vmul.f32 %v302, %v311
        %v316 = vmul.f32 %v303, %v311
        %v317 = vmul.f32 %v304, %v311
        %v318 = vmul.f32 %v305, %v311
        %v319 = vmul.f32 %v306, %v311
        %v320 = vmul.f32 %v307, %v311
        %321 = vst [vmem:[%s259] sm:$0xff] %v313
        %322 = vst [vmem:[%s259 + $0x8] sm:$0xff] %v314
        %323 = vst [vmem:[%s259 + $0x10] sm:$0xff] %v315
        %324 = vst [vmem:[%s259 + $0x18] sm:$0xff] %v316
        %325 = vst [vmem:[%s259 + $0x20] sm:$0xff] %v317
        %326 = vst [vmem:[%s259 + $0x28] sm:$0xff] %v318
        %327 = vst [vmem:[%s259 + $0x30] sm:$0xff] %v319
        %328 = vst [vmem:[%s259 + $0x38] sm:$0xff] %v320
        %s329 = sand.u32 %s127, 1
        %s330 = scalar_lea.sflag [#allocation4], %s329
        %s331 = sand.u32 %s127, 1
        %s332 = smul.addr %s331, 64
        %s333 = scalar_lea.vmem [#allocation7], %s332
        // Predicated region
        $region41: #{tpu_custom_call.1} parent=31 // pred_check
          %p334 = pneg %p137
        $region42: #{tpu_custom_call.1} parent=31 // pred_check_branch
          %336 = sbr.rel (%p334) target = $region44
        $region43: #{tpu_custom_call.1} parent=31 // pred_region
          %s337 = smul.u32 8, %s28
          %s339 = ssub.s32 1024, 1024
          %340 = vsyncadd %s330, %s339
          %s341 = smul.addr %s27, 8
          %s342 = sadd.s32 %s337, %s341
          %s343 = smul.addr %s342, 128
          %s344 = scalar_lea.hbm %s3, %s343
          %s346 = sshll.u32 %s333, 4
          %s347 = int_to_ptr.vmem [resolvable:$true] %s346
          %349 = dma.vmem_to_hbm [thread:$0]  %s347, 1024, %s344, %s330
        $region44: #{tpu_custom_call.1} parent=31 // pred_fallthru
          _
      $region32: #{tpu_custom_call.1} parent=5 // pred_fallthru
        _
      %p350 = scmp.le.s32.totalorder 2, %s18
      // Predicated region
      $region45: #{tpu_custom_call.1} parent=5 // pred_check
        %p351 = pneg %p350
      $region46: #{tpu_custom_call.1} parent=5 // pred_check_branch
        %353 = sbr.rel (%p351) target = $region48
      $region47: #{tpu_custom_call.1} parent=5 // pred_region
        %s354 = ssub.s32 %s18, 2
        // Predicated region
        $region49: #{tpu_custom_call.1} parent=47 // pred_check
          %p355 = pneg %p143
        $region50: #{tpu_custom_call.1} parent=47 // pred_check_branch
          %357 = sbr.rel (%p355) target = $region52
        $region51: #{tpu_custom_call.1} parent=47 // pred_region
          %s358 = sand.u32 %s128, 1
          %s359 = scalar_lea.sflag [#allocation4], %s358
          %s360 = sand.u32 %s128, 1
          %s361 = smul.addr %s360, 64
          %s362 = scalar_lea.vmem [#allocation7], %s361
          %363 = dma.done %s359, 1024
        $region52: #{tpu_custom_call.1} parent=47 // pred_fallthru
          _
      $region48: #{tpu_custom_call.1} parent=5 // pred_fallthru
        _
    $region6: #{tpu_custom_call.1} parent=1 // loop_footer
      %s22 = sadd.s32 1, %s18
    $region7: #{tpu_custom_call.1} parent=1 // loop_footer_branch
      %17 = sbr.rel target = $region3
    $region8: #{tpu_custom_call.1} parent=1 // loop_exit
      _
    %364 = vsyncpa [#allocation3], 1
    %s365 = scalar_lea.sflag [#allocation3], 1
    %366 = vsyncpa %s365, 1
    %367 = vsyncpa [#allocation6], 1
    %s368 = scalar_lea.sflag [#allocation6], 1
    %369 = vsyncpa %s368, 1
    %370 = vsyncpa [#allocation4], 1
    %s371 = scalar_lea.sflag [#allocation4], 1
    %372 = vsyncpa %s371, 1

</llo_original>
